<compile_context>
chip_gen: v5e
topology: v5e:2x2
jax: 0.10.0
libtpu: 0.0.40
codegen_flags: <defaults>
</compile_context>

<pallas_src>
import numpy as np
import jax
import jax.numpy as jnp
from jax.experimental import pallas as pl
from jax.experimental.pallas import tpu as pltpu

NUM_STATES = 7
_PADDED_STATES = 8      # 7 -> 8 sublane padding (full vreg rows, no masked sublane store)
_LANE = 128


# ----------------------- parameter setup (plain JAX / numpy glue, one-time) -----------------------

def make_transition_indices(model_index=0):
    Ir = 0
    I = list(range(1, 4))
    E = list(range(4, 7))
    indices = [(Ir, Ir), (Ir, E[0]), (E[2], Ir)]
    for cds in range(3):
        indices.append((E[cds], E[(cds + 1) % 3]))
        indices.append((E[cds], I[cds]))
        indices.append((I[cds], I[cds]))
        indices.append((I[cds], E[(cds + 1) % 3]))
    indices = np.concatenate(
        [np.full((len(indices), 1), model_index, dtype=np.int64),
         np.array(indices, dtype=np.int64)], axis=1)
    assert len(indices) == 15
    return indices


def _is_intergenic_loop(edge):
    return edge[1] == edge[2] and edge[1] == 0


def _is_intron_loop(edge, k=1):
    return edge[1] == edge[2] and edge[1] > 0 and (edge[1] < 1 + 3 * k)


def _is_exon_transition(edge, k=1):
    found_any = False
    exon_offset = 1 + 3 * k
    for _ in range(k):
        found = (edge[2] - exon_offset == (edge[1] - exon_offset + k) % (3 * k)
                 and edge[1] >= exon_offset and (edge[1] < exon_offset + 3 * k))
        found_any = found_any or found
    return found_any


def _is_exon_1_out_transition(edge, k=1):
    return edge[1] >= 1 + 4 * k and edge[1] < 1 + 5 * k and (edge[1] != edge[2])


def _is_intergenic_out_transition(edge, k=1):
    return edge[1] == 0 and edge[2] != 0


def make_transition_init(indices, k=1, sd=0.0,
                         initial_exon_len=100, initial_intron_len=10000, initial_ir_len=10000):
    init = []
    for edge in indices:
        if _is_intergenic_loop(edge):
            p_loop = 1 - 1.0 / initial_ir_len
            init.append(-np.log(1 / p_loop - 1))
        elif _is_intron_loop(edge, k):
            p_loop = 1 - 1.0 / initial_intron_len
            init.append(-np.log(1 / p_loop - 1))
        elif _is_exon_transition(edge, k):
            p_next_exon = 1 - 1.0 / initial_exon_len
            init.append(-np.log(1 / p_next_exon - 1))
        elif _is_exon_1_out_transition(edge, k):
            init.append(np.log(1.0 / 2))
        elif _is_intergenic_out_transition(edge, k):
            init.append(np.log(1.0 / k) + np.random.normal(0.0, sd))  # sd=0 -> deterministic
        else:
            init.append(0)
    return np.array(init, dtype=np.float32)


def make_A_single(kernel_values, indices):
    """Dense (Q, Q) transition matrix: softmax of kernel values over each state's outgoing
    edges. Every row has >= 1 edge for k=1, so no all(-inf) rows -> no NaNs."""
    logits = jnp.full((NUM_STATES, NUM_STATES), -jnp.inf, dtype=jnp.float32)
    logits = logits.at[indices[:, 1], indices[:, 2]].set(kernel_values)
    return jax.nn.softmax(logits, axis=-1)


def make_A(kernel_values, indices, num_models):
    """Module parity: (K, Q, Q) — the SAME matrix tiled num_models times."""
    return jnp.tile(make_A_single(kernel_values, indices)[None], (num_models, 1, 1))


def make_initial_distribution(starting_distribution_kernel, num_models):
    # Not used by forward(); provided for parity with the module.
    return jnp.tile(jax.nn.softmax(starting_distribution_kernel, axis=-1), (1, num_models, 1))


# ------------------------------------- Pallas kernel (hot path) -------------------------------------

def _transitioner_kernel(xt_ref, at_ref, ot_ref):
    # xt_ref: (Qs, TN)  activations^T (states on sublanes, fused K*B on lanes)
    # at_ref: (Qs, Qs)  A^T (zero-padded), same block index every step -> resident in VMEM
    # ot_ref: (Qs, TN)  output^T
    # out^T = A^T @ x^T.  Contraction dim is only 7/8, but with MiB-scale lane-dense
    # tiles the kernel is HBM-bound and MXU push/pop latency is fully hidden.
    ot_ref[...] = jnp.dot(at_ref[...], xt_ref[...],
                          preferred_element_type=jnp.float32).astype(ot_ref.dtype)


def _choose_tile_n(N, tile_n):
    """Pick a lane tile: multiple of 128, >= 2 blocks when there is enough work
    (so both v7x TensorCores are used), and bounded so double-buffered in+out blocks
    stay well under the scoped-VMEM default on every generation."""
    if N <= _LANE:
        return N                                  # full-extent block, bypasses 128-divisibility
    tn = max(_LANE, (min(tile_n, N) // _LANE) * _LANE)
    if N >= 2 * _LANE and pl.cdiv(N, tn) < 2:
        tn = max(_LANE, pl.cdiv(pl.cdiv(N, 2), _LANE) * _LANE)
    return tn


def transitioner_forward_state_major(x_sm, A_shared, *, tile_n=65536):
    """Hot-path entry point (no wrapper transposes).
    x_sm: (Qs, N) state-major activations, Qs in {7, 8} (row 7 ignored/zero if padded).
    A_shared: (7, 7) shared transition matrix (the module tiles one identical matrix).
    Returns (Qs, N): out[q, n] = sum_p x_sm[p, n] * A_shared[p, q] for q < 7."""
    Qs, N = x_sm.shape
    assert Qs in (NUM_STATES, _PADDED_STATES)
    assert A_shared.shape == (NUM_STATES, NUM_STATES)

    # A^T zero-padded to (Qs, Qs): padded input row / output row contribute nothing.
    a_t = jnp.zeros((Qs, Qs), dtype=jnp.float32)
    a_t = a_t.at[:NUM_STATES, :NUM_STATES].set(jnp.transpose(A_shared))

    tn = _choose_tile_n(N, tile_n)
    grid = (pl.cdiv(N, tn),)
    itemsize = jnp.dtype(x_sm.dtype).itemsize

    # Double-buffered VMEM footprint ~= 2 * (in + out) * Qs * tn * 4 B ~= 128 * tn bytes
    # (~8 MiB at tn=65536) -> under the 16/32/32 MiB scoped defaults; no vmem override.
    return pl.pallas_call(
        _transitioner_kernel,
        out_shape=jax.ShapeDtypeStruct((Qs, N), x_sm.dtype),
        grid_spec=pltpu.PrefetchScalarGridSpec(
            num_scalar_prefetch=0,
            grid=grid,
            in_specs=[
                pl.BlockSpec((Qs, tn), lambda j: (0, j)),   # streamed activation tile
                pl.BlockSpec((Qs, Qs), lambda j: (0, 0)),   # shared A^T, resident across steps
            ],
            out_specs=pl.BlockSpec((Qs, tn), lambda j: (0, j)),
        ),
        # Lane-tile axis is fully independent work: shard it across TensorCores.
        compiler_params=pltpu.CompilerParams(dimension_semantics=("parallel",)),
        # Advisory cost so XLA overlaps surrounding ops with this memory-bound call.
        cost_estimate=pl.CostEstimate(
            flops=2 * Qs * Qs * N,
            bytes_accessed=2 * Qs * N * itemsize + Qs * Qs * 4,
            transcendentals=0),
    )(x_sm, a_t)


def transitioner_forward(inputs, A_shared, *, tile_n=65536):
    """Module-parity entry point: inputs (K, B, Q) -> (K, B, Q), equivalent to
    torch.matmul(inputs, A) with A = tile(A_shared, (K, 1, 1)).
    The transpose/pad to state-major layout and back are XLA-side layout plumbing
    (extra HBM passes). For best end-to-end performance keep activations state-major
    across the HMM recursion and call transitioner_forward_state_major directly.
    # TODO(synk): fuse this (7x7) matmul into the per-timestep HMM forward-recursion
    # kernel where the activation block is already resident in VMEM."""
    K, B, Q = inputs.shape
    assert Q == NUM_STATES and A_shared.shape == (Q, Q)
    N = K * B
    # state-major, padded 7 -> 8 sublanes (single fused layout op)
    x_sm = jnp.zeros((_PADDED_STATES, N), dtype=inputs.dtype)
    x_sm = x_sm.at[:Q, :].set(jnp.transpose(inputs, (2, 0, 1)).reshape(Q, N))
    y_sm = transitioner_forward_state_major(x_sm, A_shared, tile_n=tile_n)
    return jnp.transpose(y_sm[:Q, :].reshape(Q, K, B), (1, 2, 0))


# --------------------------------------------- driver ---------------------------------------------

if __name__ == "__main__":
    num_models = 2
    batch = 8

    # Deterministic parameter init (matches module __init__ with init_component_sd=0).
    indices = make_transition_indices()
    transition_kernel = jnp.asarray(make_transition_init(indices, k=1, sd=0.0))[None]   # (1, 15)
    starting_distribution_kernel = jnp.zeros((1, 1, NUM_STATES), dtype=jnp.float32)     # 'zeros' init

    # recurrent_init(): build dense A. The module tiles one identical (7, 7) matrix.
    A_shared = make_A_single(transition_kernel.reshape(-1), indices)                     # (7, 7)
    A_full = make_A(transition_kernel.reshape(-1), indices, num_models)                  # (K, 7, 7)

    # Example inputs (k, b, q) — module-parity small shape.
    key = jax.random.PRNGKey(0)
    inputs = jax.random.uniform(key, (num_models, batch, NUM_STATES), dtype=jnp.float32)

    out = jax.block_until_ready(transitioner_forward(inputs, A_shared))
    ref = jnp.einsum("kbq,kqr->kbr", inputs, A_full)   # reference with the full tiled A
    assert out.shape == (num_models, batch, NUM_STATES)
    assert jnp.allclose(out, ref, atol=1e-5, rtol=1e-5)

    # Exercise the tiled (grid >= 2), ragged-N, lane-dense path via the module wrapper.
    big_B = 1000                                             # N = 2000 -> cdiv tiling, 2 blocks
    inputs_big = jax.random.uniform(jax.random.PRNGKey(1),
                                    (num_models, big_B, NUM_STATES), dtype=jnp.float32)
    out_big = jax.block_until_ready(transitioner_forward(inputs_big, A_shared, tile_n=1024))
    ref_big = jnp.einsum("kbq,qr->kbr", inputs_big, A_shared)
    assert jnp.allclose(out_big, ref_big, atol=1e-5, rtol=1e-5)

    # Exercise the transpose-free state-major hot path directly (padded 8-row layout).
    N = num_models * big_B
    x_sm = jnp.zeros((_PADDED_STATES, N), dtype=jnp.float32)
    x_sm = x_sm.at[:NUM_STATES, :].set(
        jnp.transpose(inputs_big, (2, 0, 1)).reshape(NUM_STATES, N))
    y_sm = jax.block_until_ready(
        transitioner_forward_state_major(x_sm, A_shared, tile_n=1024))
    ref_sm = jnp.einsum("pq,pn->qn", A_shared, x_sm[:NUM_STATES, :])
    assert jnp.allclose(y_sm[:NUM_STATES, :], ref_sm, atol=1e-5, rtol=1e-5)
    assert jnp.allclose(y_sm[NUM_STATES:, :], 0.0)

    print("KERNEL_OK")
</pallas_src>

<mosaic_0001>
module attributes {stable_mosaic.version = 11 : i64} {
  func.func @_transitioner_kernel(%arg0: i32, %arg1: memref<8x16xf32, #tpu.memory_space<vmem>>, %arg2: memref<8x8xf32, #tpu.memory_space<vmem>>, %arg3: memref<8x16xf32, #tpu.memory_space<vmem>>) attributes {dimension_semantics = [#tpu.dimension_semantics<parallel>], iteration_bounds = array<i64: 1>, scalar_prefetch = 0 : i64, scratch_operands = 0 : i64, tpu.core_type = #tpu.core_type<tc>, window_params = [{transform_indices = @transform_0, window_bounds = array<i64: 8, 16>}, {pipeline_mode = #tpu.pipeline_mode<synchronous>, transform_indices = @transform_1, window_bounds = array<i64: 8, 8>}, {transform_indices = @transform_2, window_bounds = array<i64: 8, 16>}]} {
    %c0 = arith.constant 0 : index
    %c0_0 = arith.constant 0 : index
    %0 = vector.load %arg2[%c0, %c0_0] : memref<8x8xf32, #tpu.memory_space<vmem>>, vector<8x8xf32>
    %c0_1 = arith.constant 0 : index
    %c0_2 = arith.constant 0 : index
    %1 = vector.load %arg1[%c0_1, %c0_2] : memref<8x16xf32, #tpu.memory_space<vmem>>, vector<8x16xf32>
    %cst = arith.constant dense<0.000000e+00> : vector<8x16xf32>
    %2 = tpu.matmul %0, %1, %cst {dimension_numbers = #tpu.dot_dimension_numbers<[1], [0], [0], [1], [0, 0, 1, 1], [], []>} : vector<8x8xf32>, vector<8x16xf32>, vector<8x16xf32> -> vector<8x16xf32>
    %c0_3 = arith.constant 0 : index
    %c0_4 = arith.constant 0 : index
    %3 = vector.load %arg3[%c0_3, %c0_4] : memref<8x16xf32, #tpu.memory_space<vmem>>, vector<8x16xf32>
    tpu.vector_store %arg3[%c0_3, %c0_4], %2 {strides = array<i32>} : memref<8x16xf32, #tpu.memory_space<vmem>>, vector<8x16xf32>,
    return
  }
  func.func @transform_0(%arg0: i32) -> (i32, i32) {
    %c0_i32 = arith.constant 0 : i32
    %c0_i32_0 = arith.constant 0 : i32
    return %c0_i32, %arg0 : i32, i32
  }
  func.func @transform_1(%arg0: i32) -> (i32, i32) {
    %c0_i32 = arith.constant 0 : i32
    %c0_i32_0 = arith.constant 0 : i32
    %c0_i32_1 = arith.constant 0 : i32
    return %c0_i32, %c0_i32_0 : i32, i32
  }
  func.func @transform_2(%arg0: i32) -> (i32, i32) {
    %c0_i32 = arith.constant 0 : i32
    %c0_i32_0 = arith.constant 0 : i32
    return %c0_i32, %arg0 : i32, i32
  }
}

</mosaic_0001>

<llo_original>
// kernel: tpu_custom_call.1
$region0: #{tpu_custom_call.1}
  #allocation0 [shape = 'u32[]', space=smem, size = 0x4, offset = 0x4, fixed_abs, tag = 'smem constant byte address 0x4 - core index']
  #allocation1 [shape = 'u32[72,128]{1,0:T(1,128)}', space=vmem, size = 0x9000, scoped, tag = 'internal scratch']
  %s0 = inlined_call_operand.hbm [shape: f32[8,16], index: 0, kind: input, shape index: {}]
  %s1 = inlined_call_operand.hbm [shape: f32[8,8], index: 1, kind: input, shape index: {}]
  %s2 = inlined_call_operand.hbm [shape: f32[8,16], index: 2, kind: output, shape index: {}]
  %s3 = sld [smem:[#allocation0]]
  $region26: #{tpu_custom_call.1} parent=0
    _
  %s5 = ssub.s32 1, %s3
  %s6 = scalar_select 0, %s5, %s3
  $region1: #{tpu_custom_call.1} parent=0
    #allocation2 [shape = 'u8[4096]{0}', space=vmem, size = 0x1000, scoped, tag = 'input window, operand 0, single buffered']
    #allocation3 [shape = 's32[1]{0}', space=sflag, size = 0x4, scoped, tag = 'scoped memory for tpu_custom_call.1']
    #allocation4 [shape = 's32[1]{0}', space=sflag, size = 0x4, scoped, tag = 'scoped memory for tpu_custom_call.1']
    #allocation5 [shape = 'u8[4096]{0}', space=vmem, size = 0x1000, scoped, tag = 'input window, operand 1, single buffered']
    #allocation6 [shape = 's32[1]{0}', space=sflag, size = 0x4, scoped, tag = 'scoped memory for tpu_custom_call.1']
    #allocation7 [shape = 'u8[4096]{0}', space=vmem, size = 0x1000, scoped, tag = 'output window, operand 0, single buffered']
    %7 = vsyncpa [#allocation3], 0
    %8 = vsyncpa [#allocation6], 0
    %9 = vsyncpa [#allocation4], 0
    // Predicated region
    $region2: #{tpu_custom_call.1} parent=1 // pred_check
      _
    $region3: #{tpu_custom_call.1} parent=1 // pred_check_branch
      %11 = sbr.rel (0) target = $region5
    $region4: #{tpu_custom_call.1} parent=1 // pred_region
      %13 = vsyncadd [#allocation3], 0
      %s15 = sshll.u32 %s0, 4
      %s16 = int_to_ptr.hbm [resolvable:$true] %s15
      %s17 = sshll.u32 [#allocation2], 4
      %s18 = int_to_ptr.vmem [resolvable:$true] %s17
      %20 = dma.hbm_to_vmem [thread:$0]  %s16, 128, %s18, [#allocation3]
    $region5: #{tpu_custom_call.1} parent=1 // pred_fallthru
      _
    // Predicated region
    $region6: #{tpu_custom_call.1} parent=1 // pred_check
      _
    $region7: #{tpu_custom_call.1} parent=1 // pred_check_branch
      %22 = sbr.rel (0) target = $region9
    $region8: #{tpu_custom_call.1} parent=1 // pred_region
      %24 = vsyncadd [#allocation6], 0
      %s26 = sshll.u32 %s1, 4
      %s27 = int_to_ptr.hbm [resolvable:$true] %s26
      %s28 = sshll.u32 [#allocation5], 4
      %s29 = int_to_ptr.vmem [resolvable:$true] %s28
      %31 = dma.hbm_to_vmem [thread:$0]  %s27, 128, %s29, [#allocation6]
    $region9: #{tpu_custom_call.1} parent=1 // pred_fallthru
      _
    // Predicated region
    $region10: #{tpu_custom_call.1} parent=1 // pred_check
      _
    $region11: #{tpu_custom_call.1} parent=1 // pred_check_branch
      %33 = sbr.rel (0) target = $region13
    $region12: #{tpu_custom_call.1} parent=1 // pred_region
      %35 = dma.done [#allocation3], 128
    $region13: #{tpu_custom_call.1} parent=1 // pred_fallthru
      _
    // Predicated region
    $region14: #{tpu_custom_call.1} parent=1 // pred_check
      _
    $region15: #{tpu_custom_call.1} parent=1 // pred_check_branch
      %37 = sbr.rel (0) target = $region17
    $region16: #{tpu_custom_call.1} parent=1 // pred_region
      %39 = dma.done [#allocation6], 128
    $region17: #{tpu_custom_call.1} parent=1 // pred_fallthru
      _
    %v40 = vld [vmem:[#allocation5] sm:$0xff]
    %v41 = vld [vmem:[#allocation2] sm:$0xff]
    %vm42 = vcmask 64512
    %v44 = vsel %vm42, %v40, 0
    %46 = vmatpush.msra.mxu0 0.0
    %47 = vmatpush.msra.mxu0 0.0
    %48 = vmatpush.msra.mxu0 0.0
    %49 = vmatpush.msra.mxu0 0.0
    %50 = vmatpush.msra.mxu0 0.0
    %51 = vmatpush.msra.mxu0 0.0
    %52 = vmatpush.msra.mxu0 0.0
    %53 = vmatpush.msra.mxu0 0.0
    %54 = vmatpush.msra.mxu0 0.0
    %55 = vmatpush.msra.mxu0 0.0
    %56 = vmatpush.msra.mxu0 0.0
    %57 = vmatpush.msra.mxu0 0.0
    %58 = vmatpush.msra.mxu0 0.0
    %59 = vmatpush.msra.mxu0 0.0
    %60 = vmatpush.msra.mxu0 0.0
    %61 = vmatpush.msra.mxu0 %v41
    %62 = vmatmul.f32.gmra.mxu0 %v44
    %v63 = vpop.f32.mrf.mxu0
    %v64 = vadd.f32 0.0, %v63
    %65 = vdwg.mxu0
    %vm66 = vcmask 130048
    %67 = vst.msk [vmem:[#allocation7] sm:$0xff] %vm66, %v64
    // Predicated region
    $region18: #{tpu_custom_call.1} parent=1 // pred_check
      _
    $region19: #{tpu_custom_call.1} parent=1 // pred_check_branch
      %69 = sbr.rel (0) target = $region21
    $region20: #{tpu_custom_call.1} parent=1 // pred_region
      %71 = vsyncadd [#allocation4], 0
      %s73 = sshll.u32 [#allocation7], 4
      %s74 = int_to_ptr.vmem [resolvable:$true] %s73
      %s75 = sshll.u32 %s2, 4
      %s76 = int_to_ptr.hbm [resolvable:$true] %s75
      %78 = dma.vmem_to_hbm [thread:$0]  %s74, 128, %s76, [#allocation4]
    $region21: #{tpu_custom_call.1} parent=1 // pred_fallthru
      _
    // Predicated region
    $region22: #{tpu_custom_call.1} parent=1 // pred_check
      _
    $region23: #{tpu_custom_call.1} parent=1 // pred_check_branch
      %80 = sbr.rel (0) target = $region25
    $region24: #{tpu_custom_call.1} parent=1 // pred_region
      %82 = dma.done [#allocation4], 128
    $region25: #{tpu_custom_call.1} parent=1 // pred_fallthru
      _
    %83 = vsyncpa [#allocation3], 1
    %84 = vsyncpa [#allocation6], 1
    %85 = vsyncpa [#allocation4], 1

</llo_original>
